<compile_context>
chip_gen: v6e
topology: v6e:2x2x1
jax: 0.10.0
libtpu: 0.0.40
codegen_flags: <defaults>
</compile_context>

<pallas_src>
import functools

import jax
import jax.numpy as jnp
from jax.experimental import pallas as pl
from jax.experimental.pallas import tpu as pltpu

EPS = 1e-5
MOMENTUM = 0.9


def _pick_m_tile(M, C, dtype_bytes=4, target_block_bytes=1 << 20, max_lanes=8192):
    """Largest multiple-of-128 lane tile that divides M, sized to roughly
    `target_block_bytes` per block (Pallas double-buffers each BlockSpec)."""
    if M % 128 != 0:
        return M  # full-extent lane dim (always a legal block shape)
    budget_lanes = max(128, target_block_bytes // (dtype_bytes * max(C, 1)))
    t = min(M, max_lanes, budget_lanes)
    t -= t % 128
    while t > 128 and M % t != 0:
        t -= 128
    return max(t, 128)


def _bn_stats_kernel(x_ref, gamma_ref, beta_ref, mm_ref, mv_ref,
                     scale_ref, shift_ref, new_mm_ref, new_mv_ref,
                     sum_acc, sq_acc, *, eps, momentum, inv_count):
    """Accumulate per-channel sum / sum-of-squares; finalize scale/shift/stats."""
    n = pl.program_id(0)
    m = pl.program_id(1)

    @pl.when(jnp.logical_and(n == 0, m == 0))
    def _init():
        sum_acc[...] = jnp.zeros_like(sum_acc)
        sq_acc[...] = jnp.zeros_like(sq_acc)

    x = x_ref[0].astype(jnp.float32)                        # (C, M_tile)
    # NOTE: these lane reductions could also be pushed onto the MXU via a
    # jnp.dot against a ones vector; the pass is DMA-bound either way.
    sum_acc[...] += jnp.sum(x, axis=-1, keepdims=True)       # (C, 1)
    sq_acc[...] += jnp.sum(x * x, axis=-1, keepdims=True)    # (C, 1)

    @pl.when(jnp.logical_and(n == pl.num_programs(0) - 1,
                             m == pl.num_programs(1) - 1))
    def _finalize():
        mean = sum_acc[...] * inv_count                      # (C, 1)
        var = jnp.maximum(sq_acc[...] * inv_count - mean * mean, 0.0)
        inv_std = jax.lax.rsqrt(var + eps)
        scale = gamma_ref[...] * inv_std
        scale_ref[...] = scale
        shift_ref[...] = beta_ref[...] - mean * scale
        new_mm_ref[...] = momentum * mm_ref[...] + (1.0 - momentum) * mean
        new_mv_ref[...] = momentum * mv_ref[...] + (1.0 - momentum) * var


def _bn_normalize_kernel(x_ref, scale_ref, shift_ref, y_ref):
    """Y = X * scale + shift, per channel (single mul + add per element)."""
    x = x_ref[0].astype(jnp.float32)                         # (C, M_tile)
    y_ref[0] = (x * scale_ref[...] + shift_ref[...]).astype(y_ref.dtype)


def batch_norm_pallas(x_nchw, gamma, beta, moving_mean, moving_var,
                      eps=EPS, momentum=MOMENTUM):
    """x_nchw: (N, C, H, W); gamma/beta/moving_*: (1, C, 1, 1).

    Returns (Y in NCHW, new_moving_mean (1,C,1,1), new_moving_var (1,C,1,1)).
    """
    N, C, H, W = x_nchw.shape
    M = H * W

    # Free (contiguous) reshapes only -- no host-side transposes.
    x3d = x_nchw.reshape(N, C, M)
    g = gamma.reshape(C, 1).astype(jnp.float32)
    b = beta.reshape(C, 1).astype(jnp.float32)
    mm = moving_mean.reshape(C, 1).astype(jnp.float32)
    mv = moving_var.reshape(C, 1).astype(jnp.float32)

    dtype_bytes = jnp.dtype(x_nchw.dtype).itemsize
    m_tile = _pick_m_tile(M, C, dtype_bytes=max(dtype_bytes, 4))
    n_m = M // m_tile
    inv_count = 1.0 / float(N * M)

    x_spec = pl.BlockSpec((1, C, m_tile), lambda n, m: (n, 0, m))
    colvec = pl.BlockSpec((C, 1), lambda n, m: (0, 0))

    # ---------------- Pass 1: per-channel statistics ----------------
    scale, shift, new_mm, new_mv = pl.pallas_call(
        functools.partial(_bn_stats_kernel, eps=eps, momentum=momentum,
                          inv_count=inv_count),
        out_shape=(
            jax.ShapeDtypeStruct((C, 1), jnp.float32),   # scale
            jax.ShapeDtypeStruct((C, 1), jnp.float32),   # shift
            jax.ShapeDtypeStruct((C, 1), jnp.float32),   # new moving_mean
            jax.ShapeDtypeStruct((C, 1), jnp.float32),   # new moving_var
        ),
        grid=(N, n_m),
        in_specs=[x_spec, colvec, colvec, colvec, colvec],
        out_specs=(colvec, colvec, colvec, colvec),
        scratch_shapes=[pltpu.VMEM((C, 1), jnp.float32),
                        pltpu.VMEM((C, 1), jnp.float32)],
        compiler_params=pltpu.CompilerParams(
            dimension_semantics=("arbitrary", "arbitrary")),
    )(x3d, g, b, mm, mv)

    # ---------------- Pass 2: elementwise normalize ----------------
    y3d = pl.pallas_call(
        _bn_normalize_kernel,
        out_shape=jax.ShapeDtypeStruct((N, C, M), x_nchw.dtype),
        grid=(N, n_m),
        in_specs=[x_spec, colvec, colvec],
        out_specs=x_spec,
        compiler_params=pltpu.CompilerParams(
            dimension_semantics=("parallel", "parallel")),
    )(x3d, scale, shift)

    y = y3d.reshape(N, C, H, W)
    return y, new_mm.reshape(1, C, 1, 1), new_mv.reshape(1, C, 1, 1)


def _reference(x, gamma, beta, moving_mean, moving_var, eps=EPS, momentum=MOMENTUM):
    mean = x.mean(axis=(0, 2, 3), keepdims=True)
    var = ((x - mean) ** 2).mean(axis=(0, 2, 3), keepdims=True)
    x_hat = (x - mean) / jnp.sqrt(var + eps)
    y = gamma * x_hat + beta
    new_mm = momentum * moving_mean + (1.0 - momentum) * mean
    new_mv = momentum * moving_var + (1.0 - momentum) * var
    return y, new_mm, new_mv


if __name__ == "__main__":
    key = jax.random.PRNGKey(0)
    N, C, H, W = 2, 4, 16, 16

    x = jax.random.normal(key, (N, C, H, W), dtype=jnp.float32)

    # Deterministic params matching BatchNorm.__init__(num_features=C, num_dims=4)
    gamma = jnp.ones((1, C, 1, 1), dtype=jnp.float32)
    beta = jnp.zeros((1, C, 1, 1), dtype=jnp.float32)
    moving_mean = jnp.zeros((1, C, 1, 1), dtype=jnp.float32)
    moving_var = jnp.ones((1, C, 1, 1), dtype=jnp.float32)

    y, new_mm, new_mv = batch_norm_pallas(x, gamma, beta, moving_mean, moving_var)
    jax.block_until_ready((y, new_mm, new_mv))

    y_ref, mm_ref, mv_ref = _reference(x, gamma, beta, moving_mean, moving_var)
    assert jnp.allclose(y, y_ref, atol=1e-5, rtol=1e-5)
    assert jnp.allclose(new_mm, mm_ref, atol=1e-5, rtol=1e-5)
    assert jnp.allclose(new_mv, mv_ref, atol=1e-5, rtol=1e-5)

    print("KERNEL_OK")
</pallas_src>

<mosaic_0001>
module attributes {stable_mosaic.version = 11 : i64} {
  func.func @_bn_stats_kernel(%arg0: i32, %arg1: i32, %arg2: memref<1x4x256xf32, #tpu.memory_space<vmem>>, %arg3: memref<4x1xf32, #tpu.memory_space<vmem>>, %arg4: memref<4x1xf32, #tpu.memory_space<vmem>>, %arg5: memref<4x1xf32, #tpu.memory_space<vmem>>, %arg6: memref<4x1xf32, #tpu.memory_space<vmem>>, %arg7: memref<4x1xf32, #tpu.memory_space<vmem>>, %arg8: memref<4x1xf32, #tpu.memory_space<vmem>>, %arg9: memref<4x1xf32, #tpu.memory_space<vmem>>, %arg10: memref<4x1xf32, #tpu.memory_space<vmem>>, %arg11: memref<4x1xf32, #tpu.memory_space<vmem>>, %arg12: memref<4x1xf32, #tpu.memory_space<vmem>>) attributes {dimension_semantics = [#tpu.dimension_semantics<arbitrary>, #tpu.dimension_semantics<arbitrary>], iteration_bounds = array<i64: 2, 1>, scalar_prefetch = 0 : i64, scratch_operands = 2 : i64, tpu.core_type = #tpu.core_type<tc>, window_params = [{transform_indices = @transform_0, window_bounds = array<i64: 1, 4, 256>}, {pipeline_mode = #tpu.pipeline_mode<synchronous>, transform_indices = @transform_1, window_bounds = array<i64: 4, 1>}, {pipeline_mode = #tpu.pipeline_mode<synchronous>, transform_indices = @transform_2, window_bounds = array<i64: 4, 1>}, {pipeline_mode = #tpu.pipeline_mode<synchronous>, transform_indices = @transform_3, window_bounds = array<i64: 4, 1>}, {pipeline_mode = #tpu.pipeline_mode<synchronous>, transform_indices = @transform_4, window_bounds = array<i64: 4, 1>}, {pipeline_mode = #tpu.pipeline_mode<synchronous>, transform_indices = @transform_5, window_bounds = array<i64: 4, 1>}, {pipeline_mode = #tpu.pipeline_mode<synchronous>, transform_indices = @transform_6, window_bounds = array<i64: 4, 1>}, {pipeline_mode = #tpu.pipeline_mode<synchronous>, transform_indices = @transform_7, window_bounds = array<i64: 4, 1>}, {pipeline_mode = #tpu.pipeline_mode<synchronous>, transform_indices = @transform_8, window_bounds = array<i64: 4, 1>}]} {
    %c0_i32 = arith.constant 0 : i32
    %0 = arith.cmpi eq, %arg0, %c0_i32 : i32
    %c0_i32_0 = arith.constant 0 : i32
    %1 = arith.cmpi eq, %arg1, %c0_i32_0 : i32
    %2 = arith.andi %0, %1 : i1
    %3 = arith.extui %2 : i1 to i32
    %c0_i32_1 = arith.constant 0 : i32
    %4 = arith.cmpi ne, %3, %c0_i32_1 : i32
    scf.if %4 {
      %cst_15 = arith.constant 0.000000e+00 : f32
      %23 = vector.broadcast %cst_15 : f32 to vector<4x1xf32>
      %c0_16 = arith.constant 0 : index
      %c0_17 = arith.constant 0 : index
      %24 = vector.load %arg11[%c0_16, %c0_17] : memref<4x1xf32, #tpu.memory_space<vmem>>, vector<4x1xf32>
      tpu.vector_store %arg11[%c0_16, %c0_17], %23 {strides = array<i32>} : memref<4x1xf32, #tpu.memory_space<vmem>>, vector<4x1xf32>,
      %cst_18 = arith.constant 0.000000e+00 : f32
      %25 = vector.broadcast %cst_18 : f32 to vector<4x1xf32>
      %c0_19 = arith.constant 0 : index
      %c0_20 = arith.constant 0 : index
      %26 = vector.load %arg12[%c0_19, %c0_20] : memref<4x1xf32, #tpu.memory_space<vmem>>, vector<4x1xf32>
      tpu.vector_store %arg12[%c0_19, %c0_20], %25 {strides = array<i32>} : memref<4x1xf32, #tpu.memory_space<vmem>>, vector<4x1xf32>,
    } else {
    }
    %c0 = arith.constant 0 : index
    %c0_2 = arith.constant 0 : index
    %c0_3 = arith.constant 0 : index
    %5 = vector.load %arg2[%c0, %c0_2, %c0_3] : memref<1x4x256xf32, #tpu.memory_space<vmem>>, vector<1x4x256xf32>
    %6 = vector.shape_cast %5 : vector<1x4x256xf32> to vector<4x256xf32>
    %c0_4 = arith.constant 0 : index
    %c0_5 = arith.constant 0 : index
    %7 = vector.load %arg11[%c0_4, %c0_5] : memref<4x1xf32, #tpu.memory_space<vmem>>, vector<4x1xf32>
    %cst = arith.constant dense<0.000000e+00> : vector<4xf32>
    %8 = vector.multi_reduction <add>, %6, %cst [1] : vector<4x256xf32> to vector<4xf32>
    %9 = vector.shape_cast %8 : vector<4xf32> to vector<4x1xf32>
    %10 = arith.addf %7, %9 : vector<4x1xf32>
    %c0_6 = arith.constant 0 : index
    %c0_7 = arith.constant 0 : index
    %11 = vector.load %arg11[%c0_6, %c0_7] : memref<4x1xf32, #tpu.memory_space<vmem>>, vector<4x1xf32>
    tpu.vector_store %arg11[%c0_6, %c0_7], %10 {strides = array<i32>} : memref<4x1xf32, #tpu.memory_space<vmem>>, vector<4x1xf32>,
    %c0_8 = arith.constant 0 : index
    %c0_9 = arith.constant 0 : index
    %12 = vector.load %arg12[%c0_8, %c0_9] : memref<4x1xf32, #tpu.memory_space<vmem>>, vector<4x1xf32>
    %13 = arith.mulf %6, %6 : vector<4x256xf32>
    %cst_10 = arith.constant dense<0.000000e+00> : vector<4xf32>
    %14 = vector.multi_reduction <add>, %13, %cst_10 [1] : vector<4x256xf32> to vector<4xf32>
    %15 = vector.shape_cast %14 : vector<4xf32> to vector<4x1xf32>
    %16 = arith.addf %12, %15 : vector<4x1xf32>
    %c0_11 = arith.constant 0 : index
    %c0_12 = arith.constant 0 : index
    %17 = vector.load %arg12[%c0_11, %c0_12] : memref<4x1xf32, #tpu.memory_space<vmem>>, vector<4x1xf32>
    tpu.vector_store %arg12[%c0_11, %c0_12], %16 {strides = array<i32>} : memref<4x1xf32, #tpu.memory_space<vmem>>, vector<4x1xf32>,
    %c1_i32 = arith.constant 1 : i32
    %18 = arith.cmpi eq, %arg0, %c1_i32 : i32
    %c0_i32_13 = arith.constant 0 : i32
    %19 = arith.cmpi eq, %arg1, %c0_i32_13 : i32
    %20 = arith.andi %18, %19 : i1
    %21 = arith.extui %20 : i1 to i32
    %c0_i32_14 = arith.constant 0 : i32
    %22 = arith.cmpi ne, %21, %c0_i32_14 : i32
    scf.if %22 {
      %c0_15 = arith.constant 0 : index
      %c0_16 = arith.constant 0 : index
      %23 = vector.load %arg11[%c0_15, %c0_16] : memref<4x1xf32, #tpu.memory_space<vmem>>, vector<4x1xf32>
      %cst_17 = arith.constant 0.001953125 : f32
      %24 = vector.broadcast %cst_17 : f32 to vector<4x1xf32>
      %25 = arith.mulf %23, %24 : vector<4x1xf32>
      %c0_18 = arith.constant 0 : index
      %c0_19 = arith.constant 0 : index
      %26 = vector.load %arg12[%c0_18, %c0_19] : memref<4x1xf32, #tpu.memory_space<vmem>>, vector<4x1xf32>
      %cst_20 = arith.constant 0.001953125 : f32
      %27 = vector.broadcast %cst_20 : f32 to vector<4x1xf32>
      %28 = arith.mulf %26, %27 : vector<4x1xf32>
      %29 = arith.mulf %25, %25 : vector<4x1xf32>
      %30 = arith.subf %28, %29 : vector<4x1xf32>
      %cst_21 = arith.constant 0.000000e+00 : f32
      %31 = vector.broadcast %cst_21 : f32 to vector<4x1xf32>
      %32 = arith.maximumf %30, %31 : vector<4x1xf32>
      %cst_22 = arith.constant 9.99999974E-6 : f32
      %33 = vector.broadcast %cst_22 : f32 to vector<4x1xf32>
      %34 = arith.addf %32, %33 : vector<4x1xf32>
      %35 = math.rsqrt %34 : vector<4x1xf32>
      %c0_23 = arith.constant 0 : index
      %c0_24 = arith.constant 0 : index
      %36 = vector.load %arg3[%c0_23, %c0_24] : memref<4x1xf32, #tpu.memory_space<vmem>>, vector<4x1xf32>
      %37 = arith.mulf %36, %35 : vector<4x1xf32>
      %c0_25 = arith.constant 0 : index
      %c0_26 = arith.constant 0 : index
      %38 = vector.load %arg7[%c0_25, %c0_26] : memref<4x1xf32, #tpu.memory_space<vmem>>, vector<4x1xf32>
      tpu.vector_store %arg7[%c0_25, %c0_26], %37 {strides = array<i32>} : memref<4x1xf32, #tpu.memory_space<vmem>>, vector<4x1xf32>,
      %c0_27 = arith.constant 0 : index
      %c0_28 = arith.constant 0 : index
      %39 = vector.load %arg4[%c0_27, %c0_28] : memref<4x1xf32, #tpu.memory_space<vmem>>, vector<4x1xf32>
      %40 = arith.mulf %25, %37 : vector<4x1xf32>
      %41 = arith.subf %39, %40 : vector<4x1xf32>
      %c0_29 = arith.constant 0 : index
      %c0_30 = arith.constant 0 : index
      %42 = vector.load %arg8[%c0_29, %c0_30] : memref<4x1xf32, #tpu.memory_space<vmem>>, vector<4x1xf32>
      tpu.vector_store %arg8[%c0_29, %c0_30], %41 {strides = array<i32>} : memref<4x1xf32, #tpu.memory_space<vmem>>, vector<4x1xf32>,
      %c0_31 = arith.constant 0 : index
      %c0_32 = arith.constant 0 : index
      %43 = vector.load %arg5[%c0_31, %c0_32] : memref<4x1xf32, #tpu.memory_space<vmem>>, vector<4x1xf32>
      %cst_33 = arith.constant 0.899999976 : f32
      %44 = vector.broadcast %cst_33 : f32 to vector<4x1xf32>
      %45 = arith.mulf %44, %43 : vector<4x1xf32>
      %cst_34 = arith.constant 1.000000e-01 : f32
      %46 = vector.broadcast %cst_34 : f32 to vector<4x1xf32>
      %47 = arith.mulf %46, %25 : vector<4x1xf32>
      %48 = arith.addf %45, %47 : vector<4x1xf32>
      %c0_35 = arith.constant 0 : index
      %c0_36 = arith.constant 0 : index
      %49 = vector.load %arg9[%c0_35, %c0_36] : memref<4x1xf32, #tpu.memory_space<vmem>>, vector<4x1xf32>
      tpu.vector_store %arg9[%c0_35, %c0_36], %48 {strides = array<i32>} : memref<4x1xf32, #tpu.memory_space<vmem>>, vector<4x1xf32>,
      %c0_37 = arith.constant 0 : index
      %c0_38 = arith.constant 0 : index
      %50 = vector.load %arg6[%c0_37, %c0_38] : memref<4x1xf32, #tpu.memory_space<vmem>>, vector<4x1xf32>
      %cst_39 = arith.constant 0.899999976 : f32
      %51 = vector.broadcast %cst_39 : f32 to vector<4x1xf32>
      %52 = arith.mulf %51, %50 : vector<4x1xf32>
      %cst_40 = arith.constant 1.000000e-01 : f32
      %53 = vector.broadcast %cst_40 : f32 to vector<4x1xf32>
      %54 = arith.mulf %53, %32 : vector<4x1xf32>
      %55 = arith.addf %52, %54 : vector<4x1xf32>
      %c0_41 = arith.constant 0 : index
      %c0_42 = arith.constant 0 : index
      %56 = vector.load %arg10[%c0_41, %c0_42] : memref<4x1xf32, #tpu.memory_space<vmem>>, vector<4x1xf32>
      tpu.vector_store %arg10[%c0_41, %c0_42], %55 {strides = array<i32>} : memref<4x1xf32, #tpu.memory_space<vmem>>, vector<4x1xf32>,
    } else {
    }
    return
  }
  func.func @transform_0(%arg0: i32, %arg1: i32) -> (i32, i32, i32) {
    %c0_i32 = arith.constant 0 : i32
    %c0_i32_0 = arith.constant 0 : i32
    return %arg0, %c0_i32, %arg1 : i32, i32, i32
  }
  func.func @transform_1(%arg0: i32, %arg1: i32) -> (i32, i32) {
    %c0_i32 = arith.constant 0 : i32
    %c0_i32_0 = arith.constant 0 : i32
    %c0_i32_1 = arith.constant 0 : i32
    return %c0_i32, %c0_i32_0 : i32, i32
  }
  func.func @transform_2(%arg0: i32, %arg1: i32) -> (i32, i32) {
    %c0_i32 = arith.constant 0 : i32
    %c0_i32_0 = arith.constant 0 : i32
    %c0_i32_1 = arith.constant 0 : i32
    return %c0_i32, %c0_i32_0 : i32, i32
  }
  func.func @transform_3(%arg0: i32, %arg1: i32) -> (i32, i32) {
    %c0_i32 = arith.constant 0 : i32
    %c0_i32_0 = arith.constant 0 : i32
    %c0_i32_1 = arith.constant 0 : i32
    return %c0_i32, %c0_i32_0 : i32, i32
  }
  func.func @transform_4(%arg0: i32, %arg1: i32) -> (i32, i32) {
    %c0_i32 = arith.constant 0 : i32
    %c0_i32_0 = arith.constant 0 : i32
    %c0_i32_1 = arith.constant 0 : i32
    return %c0_i32, %c0_i32_0 : i32, i32
  }
  func.func @transform_5(%arg0: i32, %arg1: i32) -> (i32, i32) {
    %c0_i32 = arith.constant 0 : i32
    %c0_i32_0 = arith.constant 0 : i32
    %c0_i32_1 = arith.constant 0 : i32
    return %c0_i32, %c0_i32_0 : i32, i32
  }
  func.func @transform_6(%arg0: i32, %arg1: i32) -> (i32, i32) {
    %c0_i32 = arith.constant 0 : i32
    %c0_i32_0 = arith.constant 0 : i32
    %c0_i32_1 = arith.constant 0 : i32
    return %c0_i32, %c0_i32_0 : i32, i32
  }
  func.func @transform_7(%arg0: i32, %arg1: i32) -> (i32, i32) {
    %c0_i32 = arith.constant 0 : i32
    %c0_i32_0 = arith.constant 0 : i32
    %c0_i32_1 = arith.constant 0 : i32
    return %c0_i32, %c0_i32_0 : i32, i32
  }
  func.func @transform_8(%arg0: i32, %arg1: i32) -> (i32, i32) {
    %c0_i32 = arith.constant 0 : i32
    %c0_i32_0 = arith.constant 0 : i32
    %c0_i32_1 = arith.constant 0 : i32
    return %c0_i32, %c0_i32_0 : i32, i32
  }
}

</mosaic_0001>

<llo_original>
// kernel: tpu_custom_call.1
$region0: #{tpu_custom_call.1}
  #allocation0 [shape = 'u32[]', space=smem, size = 0x4, offset = 0x4, fixed_abs, tag = 'smem constant byte address 0x4 - core index']
  #allocation1 [shape = 'u32[144,128]{1,0:T(1,128)}', space=vmem, size = 0x12000, scoped, tag = 'internal scratch']
  #allocation2 [shape = 'f32[4,1]{1,0:T(4,128)}', space=vmem, size = 0x800, scoped, tag = 'scratch operand']
  #allocation3 [shape = 'f32[4,1]{1,0:T(4,128)}', space=vmem, size = 0x800, scoped, tag = 'scratch operand']
  %s0 = inlined_call_operand.vmem [shape: f32[2,4,256], index: 0, kind: input, shape index: {}]
  %s1 = inlined_call_operand.vmem [shape: f32[4,1], index: 1, kind: input, shape index: {}]
  %s2 = inlined_call_operand.vmem [shape: f32[4,1], index: 2, kind: input, shape index: {}]
  %s3 = inlined_call_operand.vmem [shape: f32[4,1], index: 3, kind: input, shape index: {}]
  %s4 = inlined_call_operand.vmem [shape: f32[4,1], index: 4, kind: input, shape index: {}]
  %s5 = inlined_call_operand.vmem [shape: f32[4,1], index: 5, kind: output, shape index: {0}]
  %s6 = inlined_call_operand.vmem [shape: f32[4,1], index: 6, kind: output, shape index: {1}]
  %s7 = inlined_call_operand.vmem [shape: f32[4,1], index: 7, kind: output, shape index: {2}]
  %s8 = inlined_call_operand.vmem [shape: f32[4,1], index: 8, kind: output, shape index: {3}]
  %9 = xla_tuple %s5, %s6, %s7, %s8
  %s10 = sld [smem:[#allocation0]]
  $region85: #{tpu_custom_call.1} parent=0
    _
  %s12 = ssub.s32 1, %s10
  %s13 = scalar_select 0, %s12, %s10
  loop: start=0, step=1, limit=4
  $region2: #{tpu_custom_call.1} parent=0 // loop_pre_header
    _
  $region3: #{tpu_custom_call.1} parent=0 // loop_header
    %s15 = sphi 0, %s19
    %p16 = scmp.ge.s32.totalorder %s15, 4
    %s22 = sphi 0, %s34
    %s23 = sphi 0, %s30
    %s24 = sphi 0, %s22
    %s25 = sphi 0, %s23
    %s26 = sphi 0, %s24
    %s27 = sphi 0, %s25
    %s39 = sphi 0, %s41
    %s42 = sphi 0, %s39
    %s43 = sphi 0, %s42
    %s59 = sphi 0, %s43
    %s63 = sphi 0, %s63
    %s65 = sphi 0, %s63
    %s66 = sphi 0, %s65
    %s80 = sphi 0, %s66
    %s84 = sphi 0, %s84
    %s86 = sphi 0, %s84
    %s87 = sphi 0, %s86
    %s101 = sphi 0, %s87
    %s105 = sphi 0, %s105
    %s107 = sphi 0, %s105
    %s108 = sphi 0, %s107
    %s122 = sphi 0, %s108
    %s126 = sphi 0, %s126
    %s128 = sphi 0, %s126
    %s129 = sphi 0, %s128
    %s143 = sphi 0, %s129
    %s147 = sphi 0, %s147
    %s149 = sphi 0, %s147
    %s150 = sphi 0, %s149
    %s164 = sphi 0, %s150
    %s168 = sphi 0, %s168
    %s170 = sphi 0, %s168
    %s171 = sphi 0, %s170
    %s185 = sphi 0, %s171
    %s189 = sphi 0, %s189
    %s191 = sphi 0, %s189
    %s192 = sphi 0, %s191
    %s206 = sphi 0, %s192
    %s210 = sphi 0, %s210
    %s212 = sphi 0, %s210
    %s213 = sphi 0, %s212
    %s227 = sphi 0, %s213
  $region4: #{tpu_custom_call.1} parent=0 // loop_header_branch
    %18 = sbr.rel (%p16) target = $region8
  $region5: #{tpu_custom_call.1} parent=0 // loop_body
    %s20 = ssub.s32 %s15, 1
    %s21 = ssub.s32 %s15, 2
    %s28 = sadd.s32 1, %s23
    %p29 = scmp.ge.s32.totalorder %s28, 1
    %s30 = scalar_select %p29, 0, %s28
    %s31 = sadd.s32 1, %s22
    %s32 = scalar_select %p29, %s31, %s22
    %p33 = scmp.ge.s32.totalorder %s32, 2
    %s34 = scalar_select %p33, 0, %s32
    %s35 = ssub.s32 %s22, %s34
    %s36 = ssub.s32 %s23, %s30
    %s37 = sor.u32 %s35, %s36
    %p38 = scmp.eq.s32.totalorder %s37, 0
    %s40 = sadd.s32 %s39, 1
    %s41 = scalar_select %p38, %s39, %s40
    %p44 = pneg %p38
    %p45 = scmp.eq.s32.totalorder %s15, 1
    %p46 = por %p44, %p45
    %p47 = scmp.ne.s32.totalorder %s39, %s42
    %p48 = scmp.eq.s32.totalorder %s15, 0
    %p49 = por %p47, %p48
    %p50 = scmp.ne.s32.totalorder %s39, %s42
    %p51 = scmp.eq.s32.totalorder %s20, 1
    %p52 = por %p50, %p51
    %p53 = scmp.ne.s32.totalorder %s42, %s43
    %p54 = scmp.eq.s32.totalorder %s20, 0
    %p55 = por %p53, %p54
    %p56 = scmp.ne.s32.totalorder %s42, %s43
    %p57 = scmp.eq.s32.totalorder %s21, 1
    %p58 = por %p56, %p57
    %p60 = scmp.ne.s32.totalorder %s43, %s59
    %p61 = scmp.eq.s32.totalorder %s21, 0
    %p62 = por %p60, %p61
    %s64 = sadd.s32 %s63, 1
    %p67 = scmp.eq.s32.totalorder %s15, 1
    %p68 = scmp.ne.s32.totalorder %s63, %s65
    %p69 = scmp.eq.s32.totalorder %s15, 0
    %p70 = por %p68, %p69
    %p71 = scmp.ne.s32.totalorder %s63, %s65
    %p72 = scmp.eq.s32.totalorder %s20, 1
    %p73 = por %p71, %p72
    %p74 = scmp.ne.s32.totalorder %s65, %s66
    %p75 = scmp.eq.s32.totalorder %s20, 0
    %p76 = por %p74, %p75
    %p77 = scmp.ne.s32.totalorder %s65, %s66
    %p78 = scmp.eq.s32.totalorder %s21, 1
    %p79 = por %p77, %p78
    %p81 = scmp.ne.s32.totalorder %s66, %s80
    %p82 = scmp.eq.s32.totalorder %s21, 0
    %p83 = por %p81, %p82
    %s85 = sadd.s32 %s84, 1
    %p88 = scmp.eq.s32.totalorder %s15, 1
    %p89 = scmp.ne.s32.totalorder %s84, %s86
    %p90 = scmp.eq.s32.totalorder %s15, 0
    %p91 = por %p89, %p90
    %p92 = scmp.ne.s32.totalorder %s84, %s86
    %p93 = scmp.eq.s32.totalorder %s20, 1
    %p94 = por %p92, %p93
    %p95 = scmp.ne.s32.totalorder %s86, %s87
    %p96 = scmp.eq.s32.totalorder %s20, 0
    %p97 = por %p95, %p96
    %p98 = scmp.ne.s32.totalorder %s86, %s87
    %p99 = scmp.eq.s32.totalorder %s21, 1
    %p100 = por %p98, %p99
    %p102 = scmp.ne.s32.totalorder %s87, %s101
    %p103 = scmp.eq.s32.totalorder %s21, 0
    %p104 = por %p102, %p103
    %s106 = sadd.s32 %s105, 1
    %p109 = scmp.eq.s32.totalorder %s15, 1
    %p110 = scmp.ne.s32.totalorder %s105, %s107
    %p111 = scmp.eq.s32.totalorder %s15, 0
    %p112 = por %p110, %p111
    %p113 = scmp.ne.s32.totalorder %s105, %s107
    %p114 = scmp.eq.s32.totalorder %s20, 1
    %p115 = por %p113, %p114
    %p116 = scmp.ne.s32.totalorder %s107, %s108
    %p117 = scmp.eq.s32.totalorder %s20, 0
    %p118 = por %p116, %p117
    %p119 = scmp.ne.s32.totalorder %s107, %s108
    %p120 = scmp.eq.s32.totalorder %s21, 1
    %p121 = por %p119, %p120
    %p123 = scmp.ne.s32.totalorder %s108, %s122
    %p124 = scmp.eq.s32.totalorder %s21, 0
    %p125 = por %p123, %p124
    %s127 = sadd.s32 %s126, 1
    %p130 = scmp.eq.s32.totalorder %s15, 1
    %p131 = scmp.ne.s32.totalorder %s126, %s128
    %p132 = scmp.eq.s32.totalorder %s15, 0
    %p133 = por %p131, %p132
    %p134 = scmp.ne.s32.totalorder %s126, %s128
    %p135 = scmp.eq.s32.totalorder %s20, 1
    %p136 = por %p134, %p135
    %p137 = scmp.ne.s32.totalorder %s128, %s129
    %p138 = scmp.eq.s32.totalorder %s20, 0
    %p139 = por %p137, %p138
    %p140 = scmp.ne.s32.totalorder %s128, %s129
    %p141 = scmp.eq.s32.totalorder %s21, 1
    %p142 = por %p140, %p141
    %p144 = scmp.ne.s32.totalorder %s129, %s143
    %p145 = scmp.eq.s32.totalorder %s21, 0
    %p146 = por %p144, %p145
    %s148 = sadd.s32 %s147, 1
    %p151 = scmp.eq.s32.totalorder %s15, 1
    %p152 = scmp.ne.s32.totalorder %s147, %s149
    %p153 = scmp.eq.s32.totalorder %s15, 0
    %p154 = por %p152, %p153
    %p155 = scmp.ne.s32.totalorder %s147, %s149
    %p156 = scmp.eq.s32.totalorder %s20, 1
    %p157 = por %p155, %p156
    %p158 = scmp.ne.s32.totalorder %s149, %s150
    %p159 = scmp.eq.s32.totalorder %s20, 0
    %p160 = por %p158, %p159
    %p161 = scmp.ne.s32.totalorder %s149, %s150
    %p162 = scmp.eq.s32.totalorder %s21, 1
    %p163 = por %p161, %p162
    %p165 = scmp.ne.s32.totalorder %s150, %s164
    %p166 = scmp.eq.s32.totalorder %s21, 0
    %p167 = por %p165, %p166
    %s169 = sadd.s32 %s168, 1
    %p172 = scmp.eq.s32.totalorder %s15, 1
    %p173 = scmp.ne.s32.totalorder %s168, %s170
    %p174 = scmp.eq.s32.totalorder %s15, 0
    %p175 = por %p173, %p174
    %p176 = scmp.ne.s32.totalorder %s168, %s170
    %p177 = scmp.eq.s32.totalorder %s20, 1
    %p178 = por %p176, %p177
    %p179 = scmp.ne.s32.totalorder %s170, %s171
    %p180 = scmp.eq.s32.totalorder %s20, 0
    %p181 = por %p179, %p180
    %p182 = scmp.ne.s32.totalorder %s170, %s171
    %p183 = scmp.eq.s32.totalorder %s21, 1
    %p184 = por %p182, %p183
    %p186 = scmp.ne.s32.totalorder %s171, %s185
    %p187 = scmp.eq.s32.totalorder %s21, 0
    %p188 = por %p186, %p187
    %s190 = sadd.s32 %s189, 1
    %p193 = scmp.eq.s32.totalorder %s15, 1
    %p194 = scmp.ne.s32.totalorder %s189, %s191
    %p195 = scmp.eq.s32.totalorder %s15, 0
    %p196 = por %p194, %p195
    %p197 = scmp.ne.s32.totalorder %s189, %s191
    %p198 = scmp.eq.s32.totalorder %s20, 1
    %p199 = por %p197, %p198
    %p200 = scmp.ne.s32.totalorder %s191, %s192
    %p201 = scmp.eq.s32.totalorder %s20, 0
    %p202 = por %p200, %p201
    %p203 = scmp.ne.s32.totalorder %s191, %s192
    %p204 = scmp.eq.s32.totalorder %s21, 1
    %p205 = por %p203, %p204
    %p207 = scmp.ne.s32.totalorder %s192, %s206
    %p208 = scmp.eq.s32.totalorder %s21, 0
    %p209 = por %p207, %p208
    %s211 = sadd.s32 %s210, 1
    %p214 = scmp.eq.s32.totalorder %s15, 1
    %p215 = scmp.ne.s32.totalorder %s210, %s212
    %p216 = scmp.eq.s32.totalorder %s15, 0
    %p217 = por %p215, %p216
    %p218 = scmp.ne.s32.totalorder %s210, %s212
    %p219 = scmp.eq.s32.totalorder %s20, 1
    %p220 = por %p218, %p219
    %p221 = scmp.ne.s32.totalorder %s212, %s213
    %p222 = scmp.eq.s32.totalorder %s20, 0
    %p223 = por %p221, %p222
    %p224 = scmp.ne.s32.totalorder %s212, %s213
    %p225 = scmp.eq.s32.totalorder %s21, 1
    %p226 = por %p224, %p225
    %p228 = scmp.ne.s32.totalorder %s213, %s227
    %p229 = scmp.eq.s32.totalorder %s21, 0
    %p230 = por %p228, %p229
    %p231 = scmp.le.s32.totalorder 1, %s15
    %p232 = scmp.lt.s32.totalorder %s15, 3
    %p233 = pnand %p231, %p232
    %p234 = pneg %p233
    // Predicated region
    $region9: #{tpu_custom_call.1} parent=5 // pred_check
      _
    $region10: #{tpu_custom_call.1} parent=5 // pred_check_branch
      %236 = sbr.rel (%p233) target = $region12
    $region11: #{tpu_custom_call.1} parent=5 // pred_region
      %s237 = ssub.s32 %s15, 1
      // Predicated region
      $region13: #{tpu_custom_call.1} parent=11 // pred_check
        %p238 = pneg %p76
      $region14: #{tpu_custom_call.1} parent=11 // pred_check_branch
        %240 = sbr.rel (%p238) target = $region16
      $region15: #{tpu_custom_call.1} parent=11 // pred_region
        _
      $region16: #{tpu_custom_call.1} parent=11 // pred_fallthru
        _
      // Predicated region
      $region17: #{tpu_custom_call.1} parent=11 // pred_check
        %p241 = pneg %p97
      $region18: #{tpu_custom_call.1} parent=11 // pred_check_branch
        %243 = sbr.rel (%p241) target = $region20
      $region19: #{tpu_custom_call.1} parent=11 // pred_region
        _
      $region20: #{tpu_custom_call.1} parent=11 // pred_fallthru
        _
      // Predicated region
      $region21: #{tpu_custom_call.1} parent=11 // pred_check
        %p244 = pneg %p118
      $region22: #{tpu_custom_call.1} parent=11 // pred_check_branch
        %246 = sbr.rel (%p244) target = $region24
      $region23: #{tpu_custom_call.1} parent=11 // pred_region
        _
      $region24: #{tpu_custom_call.1} parent=11 // pred_fallthru
        _
      // Predicated region
      $region25: #{tpu_custom_call.1} parent=11 // pred_check
        %p247 = pneg %p139
      $region26: #{tpu_custom_call.1} parent=11 // pred_check_branch
        %249 = sbr.rel (%p247) target = $region28
      $region27: #{tpu_custom_call.1} parent=11 // pred_region
        _
      $region28: #{tpu_custom_call.1} parent=11 // pred_fallthru
        _
    $region12: #{tpu_custom_call.1} parent=5 // pred_fallthru
      _
    %p250 = scmp.lt.s32.totalorder %s15, 2
    // Predicated region
    $region29: #{tpu_custom_call.1} parent=5 // pred_check
      %p251 = pneg %p250
    $region30: #{tpu_custom_call.1} parent=5 // pred_check_branch
      %253 = sbr.rel (%p251) target = $region32
    $region31: #{tpu_custom_call.1} parent=5 // pred_region
      // Predicated region
      $region33: #{tpu_custom_call.1} parent=31 // pred_check
        %p254 = pneg %p49
      $region34: #{tpu_custom_call.1} parent=31 // pred_check_branch
        %256 = sbr.rel (%p254) target = $region36
      $region35: #{tpu_custom_call.1} parent=31 // pred_region
        %s257 = smul.u32 2, %s23
        %p258 = scmp.lt.s32.totalorder %s22, 1
        %s259 = scalar_select %p258, %s22, 1
        %p260 = scmp.lt.s32.totalorder %s257, 1
        %s261 = scalar_select %p260, %s257, 1
        %s262 = smul.addr %s259, 2
        %s263 = sadd.s32 %s261, %s262
        %s264 = smul.addr %s263, 4
        %s265 = scalar_lea.vmem %s0, %s264
        %s266 = smul.u32 2, %s23
      $region36: #{tpu_custom_call.1} parent=31 // pred_fallthru
        _
    $region32: #{tpu_custom_call.1} parent=5 // pred_fallthru
      _
    %p267 = scmp.le.s32.totalorder 1, %s15
    %p268 = scmp.lt.s32.totalorder %s15, 3
    %p269 = pnand %p267, %p268
    %p270 = pneg %p269
    // Predicated region
    $region37: #{tpu_custom_call.1} parent=5 // pred_check
      _
    $region38: #{tpu_custom_call.1} parent=5 // pred_check_branch
      %272 = sbr.rel (%p269) target = $region40
    $region39: #{tpu_custom_call.1} parent=5 // pred_region
      %s273 = ssub.s32 %s15, 1
      %s274 = smul.u32 2, %s25
      %p275 = scmp.lt.s32.totalorder %s24, 1
      %s276 = scalar_select %p275, %s24, 1
      %p277 = scmp.lt.s32.totalorder %s274, 1
      %s278 = scalar_select %p277, %s274, 1
      %s279 = smul.addr %s276, 2
      %s280 = sadd.s32 %s278, %s279
      %s281 = smul.addr %s280, 4
      %s282 = scalar_lea.vmem %s0, %s281
      %p283 = pneg %p55
      %p284 = pneg %p52
      %p285 = pneg %p76
      %p286 = pneg %p73
      %p287 = pneg %p97
      %p288 = pneg %p94
      %p289 = pneg %p118
      %p290 = pneg %p115
      %p291 = pneg %p139
      %p292 = pneg %p136
      %p293 = pneg %p160
      %p294 = pneg %p157
      %p295 = pneg %p181
      %p296 = pneg %p178
      %p297 = pneg %p202
      %p298 = pneg %p199
      %p299 = pneg %p223
      %p300 = pneg %p220
      %s301 = smul.u32 2, %s25
      %p302 = scmp.lt.s32.totalorder %s24, 1
      %s303 = scalar_select %p302, %s24, 1
      %p304 = scmp.lt.s32.totalorder %s301, 1
      %s305 = scalar_select %p304, %s301, 1
      %s306 = smul.addr %s303, 2
      %s307 = sadd.s32 %s305, %s306
      %s308 = smul.addr %s307, 4
      %s309 = scalar_lea.vmem %s0, %s308
      %s310 = smul.u32 2, %s25
      %p311 = scmp.eq.s32.totalorder %s24, 0
      %p312 = scmp.eq.s32.totalorder %s25, 0
      %p313 = pnand %p311, %p312
      %p314 = pneg %p313
      // Predicated region
      $region41: #{tpu_custom_call.1} parent=39 // pred_check
        _
      $region42: #{tpu_custom_call.1} parent=39 // pred_check_branch
        %316 = sbr.rel (%p313) target = $region44
      $region43: #{tpu_custom_call.1} parent=39 // pred_region
        %vm317 = vcmask 3072
        %318 = vst.msk [vmem:[#allocation2] sm:$0xf] %vm317, 0.0
        %319 = vst.msk [vmem:[#allocation3] sm:$0xf] %vm317, 0.0
      $region44: #{tpu_custom_call.1} parent=39 // pred_fallthru
        _
      %v320 = vld [vmem:[%s309] sm:$0xff]
      %v321 = vld [vmem:[#allocation2] sm:$0xf]
      %v323 = vcombine.high %v320, %v320
      %vm325 = vcmask 1043456
      %v326 = vsel %vm325, %v320, 0.0
      %v327 = vsel %vm325, %v323, 0.0
      %v328 = vadd.f32 %v326, %v327
      %329 = vadd.xlane.f32.xlu0 %v328
      %v330 = vpop.xlane.xlu0 %329
      %v331 = vadd.f32 %v321, %v330
      %vm332 = vcmask 3072
      %333 = vst.msk [vmem:[#allocation2] sm:$0xf] %vm332, %v331
      %v334 = vld [vmem:[#allocation3] sm:$0xf]
      %v335 = vmul.f32 %v320, %v320
      %v337 = vcombine.high %v335, %v335
      %v339 = vsel %vm325, %v335, 0.0
      %v340 = vsel %vm325, %v337, 0.0
      %v341 = vadd.f32 %v339, %v340
      %342 = vadd.xlane.f32.xlu0 %v341
      %v343 = vpop.xlane.xlu0 %342
      %v344 = vadd.f32 %v334, %v343
      %345 = vst.msk [vmem:[#allocation3] sm:$0xf] %vm332, %v344
      %p346 = scmp.eq.s32.totalorder %s24, 1
      %p347 = pnand %p346, %p312
      %p348 = pneg %p347
      // Predicated region
      $region45: #{tpu_custom_call.1} parent=39 // pred_check
        _
      $region46: #{tpu_custom_call.1} parent=39 // pred_check_branch
        %350 = sbr.rel (%p347) target = $region48
      $region47: #{tpu_custom_call.1} parent=39 // pred_region
        %v351 = vld [vmem:[#allocation2] sm:$0xf]
        %v352 = vmul.f32 %v351, 0.001953125
        %v353 = vld [vmem:[#allocation3] sm:$0xf]
        %v354 = vmul.f32 %v353, 0.001953125
        %v355 = vmul.f32 %v352, %v352
        %v356 = vsub.f32 %v354, %v355
        %v357 = vmax.f32 %v356, 0.0
        %v358 = vadd.f32 %v357, 1e-05
        %v359 = vrsqrt.pop %v358
        %v360 = vld [vmem:[%s1] sm:$0xf]
        %v361 = vmul.f32 %v360, %v359
        %362 = vst.msk [vmem:[%s5] sm:$0xf] %vm332, %v361
        %v363 = vld [vmem:[%s2] sm:$0xf]
        %v364 = vmul.f32 %v352, %v361
        %v365 = vsub.f32 %v363, %v364
        %366 = vst.msk [vmem:[%s6] sm:$0xf] %vm332, %v365
        %v367 = vld [vmem:[%s3] sm:$0xf]
        %v368 = vmul.f32 %v367, 0.9
        %v369 = vmul.f32 %v352, 0.1
        %v370 = vadd.f32 %v368, %v369
        %371 = vst.msk [vmem:[%s7] sm:$0xf] %vm332, %v370
        %v372 = vld [vmem:[%s4] sm:$0xf]
        %v373 = vmul.f32 %v372, 0.9
        %v374 = vmul.f32 %v357, 0.1
        %v375 = vadd.f32 %v373, %v374
        %376 = vst.msk [vmem:[%s8] sm:$0xf] %vm332, %v375
      $region48: #{tpu_custom_call.1} parent=39 // pred_fallthru
        _
      // Predicated region
      $region49: #{tpu_custom_call.1} parent=39 // pred_check
        %p377 = pneg %p157
      $region50: #{tpu_custom_call.1} parent=39 // pred_check_branch
        %379 = sbr.rel (%p377) target = $region52
      $region51: #{tpu_custom_call.1} parent=39 // pred_region
        _
      $region52: #{tpu_custom_call.1} parent=39 // pred_fallthru
        _
      // Predicated region
      $region53: #{tpu_custom_call.1} parent=39 // pred_check
        %p380 = pneg %p178
      $region54: #{tpu_custom_call.1} parent=39 // pred_check_branch
        %382 = sbr.rel (%p380) target = $region56
      $region55: #{tpu_custom_call.1} parent=39 // pred_region
        _
      $region56: #{tpu_custom_call.1} parent=39 // pred_fallthru
        _
      // Predicated region
      $region57: #{tpu_custom_call.1} parent=39 // pred_check
        %p383 = pneg %p199
      $region58: #{tpu_custom_call.1} parent=39 // pred_check_branch
        %385 = sbr.rel (%p383) target = $region60
      $region59: #{tpu_custom_call.1} parent=39 // pred_region
        _
      $region60: #{tpu_custom_call.1} parent=39 // pred_fallthru
        _
      // Predicated region
      $region61: #{tpu_custom_call.1} parent=39 // pred_check
        %p386 = pneg %p220
      $region62: #{tpu_custom_call.1} parent=39 // pred_check_branch
        %388 = sbr.rel (%p386) target = $region64
      $region63: #{tpu_custom_call.1} parent=39 // pred_region
        _
      $region64: #{tpu_custom_call.1} parent=39 // pred_fallthru
        _
      // Predicated region
      $region65: #{tpu_custom_call.1} parent=39 // pred_check
        %p389 = pneg %p157
      $region66: #{tpu_custom_call.1} parent=39 // pred_check_branch
        %391 = sbr.rel (%p389) target = $region68
      $region67: #{tpu_custom_call.1} parent=39 // pred_region
        _
      $region68: #{tpu_custom_call.1} parent=39 // pred_fallthru
        _
      // Predicated region
      $region69: #{tpu_custom_call.1} parent=39 // pred_check
        %p392 = pneg %p178
      $region70: #{tpu_custom_call.1} parent=39 // pred_check_branch
        %394 = sbr.rel (%p392) target = $region72
      $region71: #{tpu_custom_call.1} parent=39 // pred_region
        _
      $region72: #{tpu_custom_call.1} parent=39 // pred_fallthru
        _
      // Predicated region
      $region73: #{tpu_custom_call.1} parent=39 // pred_check
        %p395 = pneg %p199
      $region74: #{tpu_custom_call.1} parent=39 // pred_check_branch
        %397 = sbr.rel (%p395) target = $region76
      $region75: #{tpu_custom_call.1} parent=39 // pred_region
        _
      $region76: #{tpu_custom_call.1} parent=39 // pred_fallthru
        _
      // Predicated region
      $region77: #{tpu_custom_call.1} parent=39 // pred_check
        %p398 = pneg %p220
      $region78: #{tpu_custom_call.1} parent=39 // pred_check_branch
        %400 = sbr.rel (%p398) target = $region80
      $region79: #{tpu_custom_call.1} parent=39 // pred_region
        _
      $region80: #{tpu_custom_call.1} parent=39 // pred_fallthru
        _
    $region40: #{tpu_custom_call.1} parent=5 // pred_fallthru
      _
    %p401 = scmp.le.s32.totalorder 2, %s15
    // Predicated region
    $region81: #{tpu_custom_call.1} parent=5 // pred_check
      %p402 = pneg %p401
    $region82: #{tpu_custom_call.1} parent=5 // pred_check_branch
      %404 = sbr.rel (%p402) target = $region84
    $region83: #{tpu_custom_call.1} parent=5 // pred_region
      %s405 = ssub.s32 %s15, 2
    $region84: #{tpu_custom_call.1} parent=5 // pred_fallthru
      _
  $region6: #{tpu_custom_call.1} parent=0 // loop_footer
    %s19 = sadd.s32 1, %s15
  $region7: #{tpu_custom_call.1} parent=0 // loop_footer_branch
    %14 = sbr.rel target = $region3
  $region8: #{tpu_custom_call.1} parent=0 // loop_exit
    _

</llo_original>
